<compile_context>
chip_gen: v5e
topology: v5e:2x2
jax: 0.10.0
libtpu: 0.0.40
codegen_flags: <defaults>
</compile_context>

<pallas_src>
import functools

import jax
import jax.numpy as jnp
from jax.experimental import pallas as pl
from jax.experimental.pallas import tpu as pltpu

BN_EPS = 1e-5
LANE = 128


def _round_up(x, m):
    return ((x + m - 1) // m) * m


def _actor_kernel(scale_ref, state_ref, w1_ref, w2_ref, w3_ref, vec_ref,
                  out_ref, *, f1, f2, a, off_g1, off_be1, off_b2, off_b3):
    ratio = scale_ref[0]          # f32 scalars from SMEM (no retrace per bounds)
    min_value = scale_ref[1]

    # Static, lane-aligned slices into the packed per-feature-vector slab.
    g1 = vec_ref[:, off_g1:off_g1 + f1]       # BN gamma   [1, F1]
    be1 = vec_ref[:, off_be1:off_be1 + f1]    # BN beta    [1, F1]
    b2 = vec_ref[:, off_b2:off_b2 + f2]       # fc2 bias   [1, F2]
    b3 = vec_ref[:, off_b3:off_b3 + a]        # fc3 bias   [1, A]

    x = state_ref[...]                                          # [B, S] f32

    # fc1 (bias omitted: exactly cancelled by the BN mean subtraction below).
    h1 = jnp.dot(x.astype(jnp.bfloat16), w1_ref[...],
                 preferred_element_type=jnp.float32)            # [B, F1] f32

    # BatchNorm1d, training-mode semantics (batch stats, biased var, eps=1e-5),
    # single pass: var = E[x^2] - E[x]^2.
    inv_b = 1.0 / h1.shape[0]
    mean = jnp.sum(h1, axis=0, keepdims=True) * inv_b           # [1, F1]
    msq = jnp.sum(h1 * h1, axis=0, keepdims=True) * inv_b
    var = msq - mean * mean
    h1n = (h1 - mean) * jax.lax.rsqrt(var + BN_EPS) * g1 + be1
    h1r = jnp.maximum(h1n, 0.0)                                 # ReLU

    # fc2 + ReLU: bf16 operands, f32 accumulation on the MXU.
    h2 = jnp.dot(h1r.astype(jnp.bfloat16), w2_ref[...],
                 preferred_element_type=jnp.float32) + b2
    h2 = jnp.maximum(h2, 0.0)

    # fc3 + tanh (EUP), then affine rescale into [min_value, max_value].
    h3 = jnp.dot(h2.astype(jnp.bfloat16), w3_ref[...],
                 preferred_element_type=jnp.float32) + b3
    h3 = jnp.tanh(h3)

    out_ref[...] = (h3 + 1.0) * ratio + min_value               # [B, A]


def prepare_actor_params(params, *, max_value=1.0, min_value=-1.0):
    """One-time parameter preprocessing (run at init / after each optimizer step).

    Casts weights to bf16 (native MXU input dtype) and packs the small f32
    per-feature vectors into one lane-aligned slab so the kernel needs a
    single DMA for them. b1 is dropped: training-mode BN cancels it exactly.
    """
    w1, b1, g1, be1, w2, b2, w3, b3 = params
    del b1  # cancelled exactly by training-mode BatchNorm mean subtraction

    F1 = w1.shape[1]
    F2 = w2.shape[1]
    A = w3.shape[1]

    off_g1 = 0
    off_be1 = off_g1 + _round_up(F1, LANE)
    off_b2 = off_be1 + _round_up(F1, LANE)
    off_b3 = off_b2 + _round_up(F2, LANE)
    total = off_b3 + _round_up(A, LANE)

    vec = jnp.zeros((1, total), jnp.float32)
    vec = vec.at[:, off_g1:off_g1 + F1].set(g1)
    vec = vec.at[:, off_be1:off_be1 + F1].set(be1)
    vec = vec.at[:, off_b2:off_b2 + F2].set(b2)
    vec = vec.at[:, off_b3:off_b3 + A].set(b3)

    # Runtime scalars live in SMEM -> no recompile when the bounds change.
    scale = jnp.array([0.5 * (max_value - min_value), min_value], jnp.float32)

    return {
        "w1": w1.astype(jnp.bfloat16),
        "w2": w2.astype(jnp.bfloat16),
        "w3": w3.astype(jnp.bfloat16),
        "vec": vec,
        "scale": scale,
        "dims": (F1, F2, A),
        "offsets": (off_g1, off_be1, off_b2, off_b3),
    }


def actor_forward(state, prepared):
    """Actor forward pass: one pallas_call, no per-call preprocessing ops."""
    B, S = state.shape
    F1, F2, A = prepared["dims"]
    off_g1, off_be1, off_b2, off_b3 = prepared["offsets"]

    kernel = functools.partial(
        _actor_kernel, f1=F1, f2=F2, a=A,
        off_g1=off_g1, off_be1=off_be1, off_b2=off_b2, off_b3=off_b3)

    flops = 2 * B * (S * F1 + F1 * F2 + F2 * A)
    bytes_accessed = (state.size * 4
                      + prepared["w1"].size * 2
                      + prepared["w2"].size * 2
                      + prepared["w3"].size * 2
                      + prepared["vec"].size * 4
                      + B * A * 4)

    vmem = pl.BlockSpec(memory_space=pltpu.MemorySpace.VMEM)
    smem = pl.BlockSpec(memory_space=pltpu.MemorySpace.SMEM)

    return pl.pallas_call(
        kernel,
        out_shape=jax.ShapeDtypeStruct((B, A), jnp.float32),
        in_specs=[smem,   # [ratio, min_value]
                  vmem,   # state      [B, S]    f32
                  vmem,   # w1         [S, F1]   bf16
                  vmem,   # w2         [F1, F2]  bf16
                  vmem,   # w3         [F2, A]   bf16
                  vmem],  # packed g1/be1/b2/b3  [1, total] f32
        out_specs=vmem,
        cost_estimate=pl.CostEstimate(flops=flops,
                                      transcendentals=B * A,
                                      bytes_accessed=bytes_accessed),
    )(prepared["scale"], state,
      prepared["w1"], prepared["w2"], prepared["w3"], prepared["vec"])


def init_actor_params(key, state_size, action_size, fc1_units=128, fc2_units=256):
    """Deterministic parameter init mirroring Actor.__init__/reset_parameters.

    Weights are returned transposed ([in, out]) so the kernel computes
    y = x @ W + b directly on the MXU. Note the original hidden_init uses
    weight.size()[0] (== out_features) as 'fan_in', which we reproduce.
    """
    k = jax.random.split(key, 6)

    lim1 = 1.0 / jnp.sqrt(float(fc1_units))        # hidden_init(fc1)
    lim2 = 1.0 / jnp.sqrt(float(fc2_units))        # hidden_init(fc2)
    lim3 = 0.003

    # nn.Linear default bias init: U(-1/sqrt(in_features), 1/sqrt(in_features))
    blim1 = 1.0 / jnp.sqrt(float(state_size))
    blim2 = 1.0 / jnp.sqrt(float(fc1_units))
    blim3 = 1.0 / jnp.sqrt(float(fc2_units))

    w1 = jax.random.uniform(k[0], (state_size, fc1_units), jnp.float32, -lim1, lim1)
    b1 = jax.random.uniform(k[1], (1, fc1_units), jnp.float32, -blim1, blim1)
    g1 = jnp.ones((1, fc1_units), jnp.float32)     # BatchNorm1d gamma
    be1 = jnp.zeros((1, fc1_units), jnp.float32)   # BatchNorm1d beta
    w2 = jax.random.uniform(k[2], (fc1_units, fc2_units), jnp.float32, -lim2, lim2)
    b2 = jax.random.uniform(k[3], (1, fc2_units), jnp.float32, -blim2, blim2)
    w3 = jax.random.uniform(k[4], (fc2_units, action_size), jnp.float32, -lim3, lim3)
    b3 = jax.random.uniform(k[5], (1, action_size), jnp.float32, -blim3, blim3)

    return (w1, b1, g1, be1, w2, b2, w3, b3)


def actor_reference(state, params, *, max_value=1.0, min_value=-1.0):
    """Pure-JAX f32 reference matching the PyTorch forward (b1 included)."""
    w1, b1, g1, be1, w2, b2, w3, b3 = params
    ratio = 0.5 * (max_value - min_value)
    h1 = state @ w1 + b1
    mean = jnp.mean(h1, axis=0, keepdims=True)
    var = jnp.mean((h1 - mean) ** 2, axis=0, keepdims=True)
    h1 = (h1 - mean) / jnp.sqrt(var + BN_EPS) * g1 + be1
    h1 = jax.nn.relu(h1)
    h2 = jax.nn.relu(h1 @ w2 + b2)
    h3 = jnp.tanh(h2 @ w3 + b3)
    return (h3 + 1.0) * ratio + min_value


if __name__ == "__main__":
    key = jax.random.PRNGKey(0)
    k_param, k_state = jax.random.split(key)

    batch = 64          # multiple of 8 sublanes; amortizes launch overhead
    state_size = 16
    action_size = 4

    params = init_actor_params(k_param, state_size, action_size)
    state = jax.random.normal(k_state, (batch, state_size), dtype=jnp.float32)

    # One-time preprocessing (would be redone only when parameters change).
    prepared = prepare_actor_params(params, max_value=1.0, min_value=-1.0)

    out = actor_forward(state, prepared)
    out = jax.block_until_ready(out)

    ref = actor_reference(state, params)
    assert out.shape == (batch, action_size)
    # bf16 matmul operands with f32 accumulation -> loosened tolerance vs. f32 ref.
    err = float(jnp.max(jnp.abs(out - ref)))
    assert jnp.allclose(out, ref, atol=1e-2, rtol=1e-2), f"max abs err = {err}"

    print("KERNEL_OK")
</pallas_src>

<mosaic_0001>
module attributes {stable_mosaic.version = 11 : i64} {
  func.func @_actor_kernel(%arg0: memref<2xf32, #tpu.memory_space<smem>>, %arg1: memref<64x16xf32, #tpu.memory_space<vmem>>, %arg2: memref<16x128xbf16, #tpu.memory_space<vmem>>, %arg3: memref<128x256xbf16, #tpu.memory_space<vmem>>, %arg4: memref<256x4xbf16, #tpu.memory_space<vmem>>, %arg5: memref<1x640xf32, #tpu.memory_space<vmem>>, %arg6: memref<64x4xf32, #tpu.memory_space<vmem>>) attributes {dimension_semantics = [], scalar_prefetch = 0 : i64, scratch_operands = 0 : i64, tpu.core_type = #tpu.core_type<tc>} {
    %c0 = arith.constant 0 : index
    %0 = memref.load %arg0[%c0] : memref<2xf32, #tpu.memory_space<smem>>
    %c1 = arith.constant 1 : index
    %1 = memref.load %arg0[%c1] : memref<2xf32, #tpu.memory_space<smem>>
    %c0_0 = arith.constant 0 : index
    %c0_1 = arith.constant 0 : index
    %2 = vector.load %arg5[%c0_0, %c0_1] : memref<1x640xf32, #tpu.memory_space<vmem>>, vector<1x128xf32>
    %c0_2 = arith.constant 0 : index
    %c128 = arith.constant 128 : index
    %3 = vector.load %arg5[%c0_2, %c128] : memref<1x640xf32, #tpu.memory_space<vmem>>, vector<1x128xf32>
    %c0_3 = arith.constant 0 : index
    %c256 = arith.constant 256 : index
    %4 = vector.load %arg5[%c0_3, %c256] : memref<1x640xf32, #tpu.memory_space<vmem>>, vector<1x256xf32>
    %c0_4 = arith.constant 0 : index
    %c512 = arith.constant 512 : index
    %5 = vector.load %arg5[%c0_4, %c512] : memref<1x640xf32, #tpu.memory_space<vmem>>, vector<1x4xf32>
    %c0_5 = arith.constant 0 : index
    %c0_6 = arith.constant 0 : index
    %6 = vector.load %arg1[%c0_5, %c0_6] : memref<64x16xf32, #tpu.memory_space<vmem>>, vector<64x16xf32>
    %7 = arith.truncf %6 : vector<64x16xf32> to vector<64x16xbf16>
    %c0_7 = arith.constant 0 : index
    %c0_8 = arith.constant 0 : index
    %8 = vector.load %arg2[%c0_7, %c0_8] : memref<16x128xbf16, #tpu.memory_space<vmem>>, vector<16x128xbf16>
    %cst = arith.constant dense<0.000000e+00> : vector<64x128xf32>
    %9 = tpu.matmul %7, %8, %cst {dimension_numbers = #tpu.dot_dimension_numbers<[1], [0], [0], [1], [0, 0, 1, 1], [], []>} : vector<64x16xbf16>, vector<16x128xbf16>, vector<64x128xf32> -> vector<64x128xf32>
    %cst_9 = arith.constant dense<0.000000e+00> : vector<128xf32>
    %10 = vector.multi_reduction <add>, %9, %cst_9 [0] : vector<64x128xf32> to vector<128xf32>
    %11 = vector.shape_cast %10 : vector<128xf32> to vector<1x128xf32>
    %cst_10 = arith.constant 1.562500e-02 : f32
    %12 = vector.broadcast %cst_10 : f32 to vector<1x128xf32>
    %13 = arith.mulf %11, %12 : vector<1x128xf32>
    %14 = arith.mulf %9, %9 : vector<64x128xf32>
    %cst_11 = arith.constant dense<0.000000e+00> : vector<128xf32>
    %15 = vector.multi_reduction <add>, %14, %cst_11 [0] : vector<64x128xf32> to vector<128xf32>
    %16 = vector.shape_cast %15 : vector<128xf32> to vector<1x128xf32>
    %cst_12 = arith.constant 1.562500e-02 : f32
    %17 = vector.broadcast %cst_12 : f32 to vector<1x128xf32>
    %18 = arith.mulf %16, %17 : vector<1x128xf32>
    %19 = arith.mulf %13, %13 : vector<1x128xf32>
    %20 = arith.subf %18, %19 : vector<1x128xf32>
    %21 = vector.broadcast %13 : vector<1x128xf32> to vector<64x128xf32>
    %22 = arith.subf %9, %21 : vector<64x128xf32>
    %cst_13 = arith.constant 9.99999974E-6 : f32
    %23 = vector.broadcast %cst_13 : f32 to vector<1x128xf32>
    %24 = arith.addf %20, %23 : vector<1x128xf32>
    %25 = math.rsqrt %24 : vector<1x128xf32>
    %26 = vector.broadcast %25 : vector<1x128xf32> to vector<64x128xf32>
    %27 = arith.mulf %22, %26 : vector<64x128xf32>
    %28 = vector.broadcast %2 : vector<1x128xf32> to vector<64x128xf32>
    %29 = arith.mulf %27, %28 : vector<64x128xf32>
    %30 = vector.broadcast %3 : vector<1x128xf32> to vector<64x128xf32>
    %31 = arith.addf %29, %30 : vector<64x128xf32>
    %cst_14 = arith.constant 0.000000e+00 : f32
    %32 = vector.broadcast %cst_14 : f32 to vector<64x128xf32>
    %33 = arith.maximumf %31, %32 : vector<64x128xf32>
    %34 = arith.truncf %33 : vector<64x128xf32> to vector<64x128xbf16>
    %c0_15 = arith.constant 0 : index
    %c0_16 = arith.constant 0 : index
    %35 = vector.load %arg3[%c0_15, %c0_16] : memref<128x256xbf16, #tpu.memory_space<vmem>>, vector<128x256xbf16>
    %cst_17 = arith.constant dense<0.000000e+00> : vector<64x256xf32>
    %36 = tpu.matmul %34, %35, %cst_17 {dimension_numbers = #tpu.dot_dimension_numbers<[1], [0], [0], [1], [0, 0, 1, 1], [], []>} : vector<64x128xbf16>, vector<128x256xbf16>, vector<64x256xf32> -> vector<64x256xf32>
    %37 = vector.broadcast %4 : vector<1x256xf32> to vector<64x256xf32>
    %38 = arith.addf %36, %37 : vector<64x256xf32>
    %cst_18 = arith.constant 0.000000e+00 : f32
    %39 = vector.broadcast %cst_18 : f32 to vector<64x256xf32>
    %40 = arith.maximumf %38, %39 : vector<64x256xf32>
    %41 = arith.truncf %40 : vector<64x256xf32> to vector<64x256xbf16>
    %c0_19 = arith.constant 0 : index
    %c0_20 = arith.constant 0 : index
    %42 = vector.load %arg4[%c0_19, %c0_20] : memref<256x4xbf16, #tpu.memory_space<vmem>>, vector<256x4xbf16>
    %cst_21 = arith.constant dense<0.000000e+00> : vector<64x4xf32>
    %43 = tpu.matmul %41, %42, %cst_21 {dimension_numbers = #tpu.dot_dimension_numbers<[1], [0], [0], [1], [0, 0, 1, 1], [], []>} : vector<64x256xbf16>, vector<256x4xbf16>, vector<64x4xf32> -> vector<64x4xf32>
    %44 = vector.broadcast %5 : vector<1x4xf32> to vector<64x4xf32>
    %45 = arith.addf %43, %44 : vector<64x4xf32>
    %46 = math.tanh %45 : vector<64x4xf32>
    %cst_22 = arith.constant 1.000000e+00 : f32
    %47 = vector.broadcast %cst_22 : f32 to vector<64x4xf32>
    %48 = arith.addf %46, %47 : vector<64x4xf32>
    %49 = vector.broadcast %0 : f32 to vector<64x4xf32>
    %50 = arith.mulf %48, %49 : vector<64x4xf32>
    %51 = vector.broadcast %1 : f32 to vector<64x4xf32>
    %52 = arith.addf %50, %51 : vector<64x4xf32>
    %c0_23 = arith.constant 0 : index
    %c0_24 = arith.constant 0 : index
    %53 = vector.load %arg6[%c0_23, %c0_24] : memref<64x4xf32, #tpu.memory_space<vmem>>, vector<64x4xf32>
    tpu.vector_store %arg6[%c0_23, %c0_24], %52 {strides = array<i32>} : memref<64x4xf32, #tpu.memory_space<vmem>>, vector<64x4xf32>,
    return
  }
}

</mosaic_0001>

<llo_original>
// kernel: tpu_custom_call.1
$region0: #{tpu_custom_call.1}
  #allocation0 [shape = 'u32[]', space=smem, size = 0x4, offset = 0x4, fixed_abs, tag = 'smem constant byte address 0x4 - core index']
  #allocation1 [shape = 'u32[72,128]{1,0:T(1,128)}', space=vmem, size = 0x9000, scoped, tag = 'internal scratch']
  %s0 = inlined_call_operand.vmem [shape: f32[2], index: 0, kind: input, shape index: {}]
  %s1 = inlined_call_operand.vmem [shape: f32[64,16], index: 1, kind: input, shape index: {}]
  %s2 = inlined_call_operand.vmem [shape: bf16[16,128], index: 2, kind: input, shape index: {}]
  %s3 = inlined_call_operand.vmem [shape: bf16[128,256], index: 3, kind: input, shape index: {}]
  %s4 = inlined_call_operand.vmem [shape: bf16[256,4], index: 4, kind: input, shape index: {}]
  %s5 = inlined_call_operand.vmem [shape: f32[1,640], index: 5, kind: input, shape index: {}]
  %s6 = inlined_call_operand.vmem [shape: f32[64,4], index: 6, kind: output, shape index: {}]
  %s7 = sld [smem:[#allocation0]]
  $region38: #{tpu_custom_call.1} parent=0
    _
  %s9 = ssub.s32 1, %s7
  %s10 = scalar_select 0, %s9, %s7
  $region1: #{tpu_custom_call.1} parent=0
    #allocation2 [shape = 'u8[512]{0}', space=smem, size = 0x200, scoped, tag = 'input window, operand 0, single buffered']
    #allocation3 [shape = 's32[1]{0}', space=sflag, size = 0x4, scoped, tag = 'scoped memory for tpu_custom_call.1']
    %11 = vsyncpa [#allocation3], 0
    // Predicated region
    $region2: #{tpu_custom_call.1} parent=1 // pred_check
      _
    $region3: #{tpu_custom_call.1} parent=1 // pred_check_branch
      %13 = sbr.rel (0) target = $region5
    $region4: #{tpu_custom_call.1} parent=1 // pred_region
      %15 = vsyncadd [#allocation3], 0
      %s17 = sshll.u32 %s0, 4
      %s18 = int_to_ptr.vmem [resolvable:$true] %s17
      %20 = dma.vmem_to_smem %s18, 16, [#allocation2], [#allocation3]
    $region5: #{tpu_custom_call.1} parent=1 // pred_fallthru
      _
    // Predicated region
    $region6: #{tpu_custom_call.1} parent=1 // pred_check
      _
    $region7: #{tpu_custom_call.1} parent=1 // pred_check_branch
      %22 = sbr.rel (0) target = $region9
    $region8: #{tpu_custom_call.1} parent=1 // pred_region
      _
    $region9: #{tpu_custom_call.1} parent=1 // pred_fallthru
      _
    // Predicated region
    $region10: #{tpu_custom_call.1} parent=1 // pred_check
      _
    $region11: #{tpu_custom_call.1} parent=1 // pred_check_branch
      %24 = sbr.rel (0) target = $region13
    $region12: #{tpu_custom_call.1} parent=1 // pred_region
      _
    $region13: #{tpu_custom_call.1} parent=1 // pred_fallthru
      _
    // Predicated region
    $region14: #{tpu_custom_call.1} parent=1 // pred_check
      _
    $region15: #{tpu_custom_call.1} parent=1 // pred_check_branch
      %26 = sbr.rel (0) target = $region17
    $region16: #{tpu_custom_call.1} parent=1 // pred_region
      _
    $region17: #{tpu_custom_call.1} parent=1 // pred_fallthru
      _
    // Predicated region
    $region18: #{tpu_custom_call.1} parent=1 // pred_check
      _
    $region19: #{tpu_custom_call.1} parent=1 // pred_check_branch
      %28 = sbr.rel (0) target = $region21
    $region20: #{tpu_custom_call.1} parent=1 // pred_region
      _
    $region21: #{tpu_custom_call.1} parent=1 // pred_fallthru
      _
    // Predicated region
    $region22: #{tpu_custom_call.1} parent=1 // pred_check
      _
    $region23: #{tpu_custom_call.1} parent=1 // pred_check_branch
      %30 = sbr.rel (0) target = $region25
    $region24: #{tpu_custom_call.1} parent=1 // pred_region
      _
    $region25: #{tpu_custom_call.1} parent=1 // pred_fallthru
      _
    // Predicated region
    $region26: #{tpu_custom_call.1} parent=1 // pred_check
      _
    $region27: #{tpu_custom_call.1} parent=1 // pred_check_branch
      %32 = sbr.rel (0) target = $region29
    $region28: #{tpu_custom_call.1} parent=1 // pred_region
      %34 = dma.done [#allocation3], 16
    $region29: #{tpu_custom_call.1} parent=1 // pred_fallthru
      _
    %35 = sfence
    %s37 = sld [smem:[#allocation2]]
    %s38 = sld [smem:[#allocation2 + $0x1]]
    %v39 = vld [vmem:[%s5] sm:$0x1]
    %v40 = vld [vmem:[%s5 + $0x1] sm:$0x1]
    %v41 = vld [vmem:[%s5 + $0x2] sm:$0x3]
    %v42 = vld [vmem:[%s5 + $0x4] sm:$0x1]
    %v43 = vld [vmem:[%s1] sm:$0xff]
    %v44 = vld [vmem:[%s1 + $0x8] sm:$0xff]
    %v45 = vld [vmem:[%s1 + $0x10] sm:$0xff]
    %v46 = vld [vmem:[%s1 + $0x18] sm:$0xff]
    %v47 = vld [vmem:[%s1 + $0x20] sm:$0xff]
    %v48 = vld [vmem:[%s1 + $0x28] sm:$0xff]
    %v49 = vld [vmem:[%s1 + $0x30] sm:$0xff]
    %v50 = vld [vmem:[%s1 + $0x38] sm:$0xff]
    %v51 = vpack.c.bf16 %v44, %v43
    %v52 = vpack.c.bf16 %v46, %v45
    %v53 = vpack.c.bf16 %v48, %v47
    %v54 = vpack.c.bf16 %v50, %v49
    %v55 = vld [vmem:[%s2] sm:$0xf]
    %v56 = vld [vmem:[%s2 + $0x4] sm:$0xf]
    %v59 = vunpack.c.l.b16 %v55
    %v60 = vunpack.c.l.b16 %v56
    %v61 = vpack.c.b16 %v60, %v59
    %vm63 = vcmask 130048
    %v65 = vsel %vm63, %v51, 0
    %v68 = vsel %vm63, %v52, 0
    %v71 = vsel %vm63, %v53, 0
    %v74 = vsel %vm63, %v54, 0
    %76 = vmatpush.bf16.msra.mxu0 0
    %77 = vmatpush.bf16.msra.mxu0 0
    %78 = vmatpush.bf16.msra.mxu0 0
    %79 = vmatpush.bf16.msra.mxu0 0
    %80 = vmatpush.bf16.msra.mxu0 0
    %81 = vmatpush.bf16.msra.mxu0 0
    %82 = vmatpush.bf16.msra.mxu0 0
    %83 = vmatpush.bf16.msra.mxu0 %v61
    %84 = vmatmul.bf16.gmra.mxu0 %v65
    %v85 = vpop.f32.mrf.mxu0
    %v86 = vadd.f32 0.0, %v85
    %v87 = vpop.f32.mrf.mxu0
    %v88 = vadd.f32 0.0, %v87
    %89 = vmatmul.bf16.gmra.mxu0 %v68
    %v90 = vpop.f32.mrf.mxu0
    %v91 = vadd.f32 0.0, %v90
    %v92 = vpop.f32.mrf.mxu0
    %v93 = vadd.f32 0.0, %v92
    %94 = vmatmul.bf16.gmra.mxu0 %v71
    %v95 = vpop.f32.mrf.mxu0
    %v96 = vadd.f32 0.0, %v95
    %v97 = vpop.f32.mrf.mxu0
    %v98 = vadd.f32 0.0, %v97
    %99 = vmatmul.bf16.gmra.mxu0 %v74
    %v100 = vpop.f32.mrf.mxu0
    %v101 = vadd.f32 0.0, %v100
    %v102 = vpop.f32.mrf.mxu0
    %v103 = vadd.f32 0.0, %v102
    %104 = vdwg.mxu0
    %v105 = vadd.f32 %v86, %v88
    %v106 = vadd.f32 %v105, %v91
    %v107 = vadd.f32 %v106, %v93
    %v108 = vadd.f32 %v107, %v96
    %v109 = vadd.f32 %v108, %v98
    %v110 = vadd.f32 %v109, %v101
    %v111 = vadd.f32 %v110, %v103
    %v112 = vrot.slane %v111, 4
    %v113 = vadd.f32 %v111, %v112
    %v114 = vrot.slane %v113, 2
    %v115 = vadd.f32 %v113, %v114
    %v116 = vrot.slane %v115, 1
    %v117 = vadd.f32 %v115, %v116
    %v118 = vmul.f32 %v117, 0.015625
    %v119 = vmul.f32 %v86, %v86
    %v120 = vmul.f32 %v88, %v88
    %v121 = vmul.f32 %v91, %v91
    %v122 = vmul.f32 %v93, %v93
    %v123 = vmul.f32 %v96, %v96
    %v124 = vmul.f32 %v98, %v98
    %v125 = vmul.f32 %v101, %v101
    %v126 = vmul.f32 %v103, %v103
    %v127 = vadd.f32 %v119, %v120
    %v128 = vadd.f32 %v127, %v121
    %v129 = vadd.f32 %v128, %v122
    %v130 = vadd.f32 %v129, %v123
    %v131 = vadd.f32 %v130, %v124
    %v132 = vadd.f32 %v131, %v125
    %v133 = vadd.f32 %v132, %v126
    %v134 = vrot.slane %v133, 4
    %v135 = vadd.f32 %v133, %v134
    %v136 = vrot.slane %v135, 2
    %v137 = vadd.f32 %v135, %v136
    %v138 = vrot.slane %v137, 1
    %v139 = vadd.f32 %v137, %v138
    %v140 = vmul.f32 %v139, 0.015625
    %v141 = vmul.f32 %v118, %v118
    %v142 = vsub.f32 %v140, %v141
    %v143 = vsub.f32 %v86, %v118
    %v144 = vsub.f32 %v88, %v118
    %v145 = vsub.f32 %v91, %v118
    %v146 = vsub.f32 %v93, %v118
    %v147 = vsub.f32 %v96, %v118
    %v148 = vsub.f32 %v98, %v118
    %v149 = vsub.f32 %v101, %v118
    %v150 = vsub.f32 %v103, %v118
    %v151 = vadd.f32 %v142, 1e-05
    %v152 = vrsqrt.pop %v151
    %v153 = vmul.f32 %v152, %v151
    %v154 = vmul.f32 %v153, %v152
    %v155 = vmul.f32 0.5, %v154
    %v156 = vsub.f32 1.5, %v155
    %v157 = vmul.f32 %v152, %v156
    %vm158 = vweird.f32 %v151
    %vm159 = vweird.f32 %v152
    %vm160 = vmor %vm158, %vm159
    %v161 = vsel %vm160, %v152, %v157
    %v162 = vmul.f32 %v143, %v161
    %v163 = vmul.f32 %v144, %v161
    %v164 = vmul.f32 %v145, %v161
    %v165 = vmul.f32 %v146, %v161
    %v166 = vmul.f32 %v147, %v161
    %v167 = vmul.f32 %v148, %v161
    %v168 = vmul.f32 %v149, %v161
    %v169 = vmul.f32 %v150, %v161
    %v171 = vperm.slane %v39, 0
    %v173 = vmul.f32 %v162, %v171
    %v174 = vmul.f32 %v163, %v171
    %v175 = vmul.f32 %v164, %v171
    %v176 = vmul.f32 %v165, %v171
    %v177 = vmul.f32 %v166, %v171
    %v178 = vmul.f32 %v167, %v171
    %v179 = vmul.f32 %v168, %v171
    %v180 = vmul.f32 %v169, %v171
    %v182 = vperm.slane %v40, 0
    %v184 = vadd.f32 %v173, %v182
    %v185 = vadd.f32 %v174, %v182
    %v186 = vadd.f32 %v175, %v182
    %v187 = vadd.f32 %v176, %v182
    %v188 = vadd.f32 %v177, %v182
    %v189 = vadd.f32 %v178, %v182
    %v190 = vadd.f32 %v179, %v182
    %v191 = vadd.f32 %v180, %v182
    %v192 = vmax.f32 %v184, 0.0
    %v193 = vmax.f32 %v185, 0.0
    %v194 = vmax.f32 %v186, 0.0
    %v195 = vmax.f32 %v187, 0.0
    %v196 = vmax.f32 %v188, 0.0
    %v197 = vmax.f32 %v189, 0.0
    %v198 = vmax.f32 %v190, 0.0
    %v199 = vmax.f32 %v191, 0.0
    %v200 = vpack.c.bf16 %v193, %v192
    %v201 = vpack.c.bf16 %v195, %v194
    %v202 = vpack.c.bf16 %v197, %v196
    %v203 = vpack.c.bf16 %v199, %v198
    %v204 = vld [vmem:[%s3] sm:$0xff]
    %v205 = vld [vmem:[%s3 + $0x8] sm:$0xff]
    %v206 = vld [vmem:[%s3 + $0x10] sm:$0xff]
    %v207 = vld [vmem:[%s3 + $0x18] sm:$0xff]
    %v208 = vld [vmem:[%s3 + $0x20] sm:$0xff]
    %v209 = vld [vmem:[%s3 + $0x28] sm:$0xff]
    %v210 = vld [vmem:[%s3 + $0x30] sm:$0xff]
    %v211 = vld [vmem:[%s3 + $0x38] sm:$0xff]
    %v212 = vld [vmem:[%s3 + $0x40] sm:$0xff]
    %v213 = vld [vmem:[%s3 + $0x48] sm:$0xff]
    %v214 = vld [vmem:[%s3 + $0x50] sm:$0xff]
    %v215 = vld [vmem:[%s3 + $0x58] sm:$0xff]
    %v216 = vld [vmem:[%s3 + $0x60] sm:$0xff]
    %v217 = vld [vmem:[%s3 + $0x68] sm:$0xff]
    %v218 = vld [vmem:[%s3 + $0x70] sm:$0xff]
    %v219 = vld [vmem:[%s3 + $0x78] sm:$0xff]
    %v221 = vperm.slane %v41, 0
    %v222 = vperm.slane %v41, 1
    %v241 = vunpack.c.l.b16 %v204
    %v242 = vunpack.c.h.b16 %v204
    %v243 = vunpack.c.l.b16 %v205
    %v244 = vunpack.c.h.b16 %v205
    %v245 = vunpack.c.l.b16 %v206
    %v246 = vunpack.c.h.b16 %v206
    %v247 = vunpack.c.l.b16 %v207
    %v248 = vunpack.c.h.b16 %v207
    %v249 = vunpack.c.l.b16 %v208
    %v250 = vunpack.c.h.b16 %v208
    %v251 = vunpack.c.l.b16 %v209
    %v252 = vunpack.c.h.b16 %v209
    %v253 = vunpack.c.l.b16 %v210
    %v254 = vunpack.c.h.b16 %v210
    %v255 = vunpack.c.l.b16 %v211
    %v256 = vunpack.c.h.b16 %v211
    %v257 = vunpack.c.l.b16 %v212
    %v258 = vunpack.c.h.b16 %v212
    %v259 = vunpack.c.l.b16 %v213
    %v260 = vunpack.c.h.b16 %v213
    %v261 = vunpack.c.l.b16 %v214
    %v262 = vunpack.c.h.b16 %v214
    %v263 = vunpack.c.l.b16 %v215
    %v264 = vunpack.c.h.b16 %v215
    %v265 = vunpack.c.l.b16 %v216
    %v266 = vunpack.c.h.b16 %v216
    %v267 = vunpack.c.l.b16 %v217
    %v268 = vunpack.c.h.b16 %v217
    %v269 = vunpack.c.l.b16 %v218
    %v270 = vunpack.c.h.b16 %v218
    %v271 = vunpack.c.l.b16 %v219
    %v272 = vunpack.c.h.b16 %v219
    %v273 = vpack.c.b16 %v243, %v241
    %v274 = vpack.c.b16 %v244, %v242
    %v275 = vpack.c.b16 %v247, %v245
    %v276 = vpack.c.b16 %v248, %v246
    %v277 = vpack.c.b16 %v251, %v249
    %v278 = vpack.c.b16 %v252, %v250
    %v279 = vpack.c.b16 %v255, %v253
    %v280 = vpack.c.b16 %v256, %v254
    %v281 = vpack.c.b16 %v259, %v257
    %v282 = vpack.c.b16 %v260, %v258
    %v283 = vpack.c.b16 %v263, %v261
    %v284 = vpack.c.b16 %v264, %v262
    %v285 = vpack.c.b16 %v267, %v265
    %v286 = vpack.c.b16 %v268, %v266
    %v287 = vpack.c.b16 %v271, %v269
    %v288 = vpack.c.b16 %v272, %v270
    %305 = vmatpush.bf16.msra.mxu0 %v287
    %306 = vmatpush.bf16.msra.mxu0 %v285
    %307 = vmatpush.bf16.msra.mxu0 %v283
    %308 = vmatpush.bf16.msra.mxu0 %v281
    %309 = vmatpush.bf16.msra.mxu0 %v279
    %310 = vmatpush.bf16.msra.mxu0 %v277
    %311 = vmatpush.bf16.msra.mxu0 %v275
    %312 = vmatpush.bf16.msra.mxu0 %v273
    %313 = vmatmul.bf16.gmra.mxu0 %v200
    %v314 = vpop.f32.mrf.mxu0
    %v315 = vadd.f32 %v221, %v314
    %v316 = vpop.f32.mrf.mxu0
    %v317 = vadd.f32 %v221, %v316
    %318 = vmatmul.bf16.gmra.mxu0 %v201
    %v319 = vpop.f32.mrf.mxu0
    %v320 = vadd.f32 %v221, %v319
    %v321 = vpop.f32.mrf.mxu0
    %v322 = vadd.f32 %v221, %v321
    %323 = vmatmul.bf16.gmra.mxu0 %v202
    %v324 = vpop.f32.mrf.mxu0
    %v325 = vadd.f32 %v221, %v324
    %v326 = vpop.f32.mrf.mxu0
    %v327 = vadd.f32 %v221, %v326
    %328 = vmatmul.bf16.gmra.mxu0 %v203
    %v329 = vpop.f32.mrf.mxu0
    %v330 = vadd.f32 %v221, %v329
    %v331 = vpop.f32.mrf.mxu0
    %v332 = vadd.f32 %v221, %v331
    %333 = vdwg.mxu0
    %334 = vmatpush.bf16.msra.mxu0 %v288
    %335 = vmatpush.bf16.msra.mxu0 %v286
    %336 = vmatpush.bf16.msra.mxu0 %v284
    %337 = vmatpush.bf16.msra.mxu0 %v282
    %338 = vmatpush.bf16.msra.mxu0 %v280
    %339 = vmatpush.bf16.msra.mxu0 %v278
    %340 = vmatpush.bf16.msra.mxu0 %v276
    %341 = vmatpush.bf16.msra.mxu0 %v274
    %342 = vmatmul.bf16.gmra.mxu0 %v200
    %v343 = vpop.f32.mrf.mxu0
    %v344 = vadd.f32 %v222, %v343
    %v345 = vpop.f32.mrf.mxu0
    %v346 = vadd.f32 %v222, %v345
    %347 = vmatmul.bf16.gmra.mxu0 %v201
    %v348 = vpop.f32.mrf.mxu0
    %v349 = vadd.f32 %v222, %v348
    %v350 = vpop.f32.mrf.mxu0
    %v351 = vadd.f32 %v222, %v350
    %352 = vmatmul.bf16.gmra.mxu0 %v202
    %v353 = vpop.f32.mrf.mxu0
    %v354 = vadd.f32 %v222, %v353
    %v355 = vpop.f32.mrf.mxu0
    %v356 = vadd.f32 %v222, %v355
    %357 = vmatmul.bf16.gmra.mxu0 %v203
    %v358 = vpop.f32.mrf.mxu0
    %v359 = vadd.f32 %v222, %v358
    %v360 = vpop.f32.mrf.mxu0
    %v361 = vadd.f32 %v222, %v360
    %362 = vdwg.mxu0
    %v363 = vmax.f32 %v315, 0.0
    %v364 = vmax.f32 %v344, 0.0
    %v365 = vmax.f32 %v317, 0.0
    %v366 = vmax.f32 %v346, 0.0
    %v367 = vmax.f32 %v320, 0.0
    %v368 = vmax.f32 %v349, 0.0
    %v369 = vmax.f32 %v322, 0.0
    %v370 = vmax.f32 %v351, 0.0
    %v371 = vmax.f32 %v325, 0.0
    %v372 = vmax.f32 %v354, 0.0
    %v373 = vmax.f32 %v327, 0.0
    %v374 = vmax.f32 %v356, 0.0
    %v375 = vmax.f32 %v330, 0.0
    %v376 = vmax.f32 %v359, 0.0
    %v377 = vmax.f32 %v332, 0.0
    %v378 = vmax.f32 %v361, 0.0
    %v379 = vpack.c.bf16 %v365, %v363
    %v380 = vpack.c.bf16 %v366, %v364
    %v381 = vpack.c.bf16 %v369, %v367
    %v382 = vpack.c.bf16 %v370, %v368
    %v383 = vpack.c.bf16 %v373, %v371
    %v384 = vpack.c.bf16 %v374, %v372
    %v385 = vpack.c.bf16 %v377, %v375
    %v386 = vpack.c.bf16 %v378, %v376
    %v387 = vld [vmem:[%s4] sm:$0xf]
    %v388 = vld [vmem:[%s4 + $0x4] sm:$0xf]
    %v389 = vld [vmem:[%s4 + $0x8] sm:$0xf]
    %v390 = vld [vmem:[%s4 + $0xc] sm:$0xf]
    %v391 = vld [vmem:[%s4 + $0x10] sm:$0xf]
    %v392 = vld [vmem:[%s4 + $0x14] sm:$0xf]
    %v393 = vld [vmem:[%s4 + $0x18] sm:$0xf]
    %v394 = vld [vmem:[%s4 + $0x1c] sm:$0xf]
    %v395 = vld [vmem:[%s4 + $0x20] sm:$0xf]
    %v396 = vld [vmem:[%s4 + $0x24] sm:$0xf]
    %v397 = vld [vmem:[%s4 + $0x28] sm:$0xf]
    %v398 = vld [vmem:[%s4 + $0x2c] sm:$0xf]
    %v399 = vld [vmem:[%s4 + $0x30] sm:$0xf]
    %v400 = vld [vmem:[%s4 + $0x34] sm:$0xf]
    %v401 = vld [vmem:[%s4 + $0x38] sm:$0xf]
    %v402 = vld [vmem:[%s4 + $0x3c] sm:$0xf]
    %v403 = vld [vmem:[%s4 + $0x40] sm:$0xf]
    %v404 = vld [vmem:[%s4 + $0x44] sm:$0xf]
    %v405 = vld [vmem:[%s4 + $0x48] sm:$0xf]
    %v406 = vld [vmem:[%s4 + $0x4c] sm:$0xf]
    %v407 = vld [vmem:[%s4 + $0x50] sm:$0xf]
    %v408 = vld [vmem:[%s4 + $0x54] sm:$0xf]
    %v409 = vld [vmem:[%s4 + $0x58] sm:$0xf]
    %v410 = vld [vmem:[%s4 + $0x5c] sm:$0xf]
    %v411 = vld [vmem:[%s4 + $0x60] sm:$0xf]
    %v412 = vld [vmem:[%s4 + $0x64] sm:$0xf]
    %v413 = vld [vmem:[%s4 + $0x68] sm:$0xf]
    %v414 = vld [vmem:[%s4 + $0x6c] sm:$0xf]
    %v415 = vld [vmem:[%s4 + $0x70] sm:$0xf]
    %v416 = vld [vmem:[%s4 + $0x74] sm:$0xf]
    %v417 = vld [vmem:[%s4 + $0x78] sm:$0xf]
    %v418 = vld [vmem:[%s4 + $0x7c] sm:$0xf]
    %v420 = vperm.slane %v42, 0
    %v454 = vunpack.c.l.b16 %v387
    %v455 = vunpack.c.l.b16 %v388
    %v456 = vunpack.c.l.b16 %v389
    %v457 = vunpack.c.l.b16 %v390
    %v458 = vunpack.c.l.b16 %v391
    %v459 = vunpack.c.l.b16 %v392
    %v460 = vunpack.c.l.b16 %v393
    %v461 = vunpack.c.l.b16 %v394
    %v462 = vunpack.c.l.b16 %v395
    %v463 = vunpack.c.l.b16 %v396
    %v464 = vunpack.c.l.b16 %v397
    %v465 = vunpack.c.l.b16 %v398
    %v466 = vunpack.c.l.b16 %v399
    %v467 = vunpack.c.l.b16 %v400
    %v468 = vunpack.c.l.b16 %v401
    %v469 = vunpack.c.l.b16 %v402
    %v470 = vunpack.c.l.b16 %v403
    %v471 = vunpack.c.l.b16 %v404
    %v472 = vunpack.c.l.b16 %v405
    %v473 = vunpack.c.l.b16 %v406
    %v474 = vunpack.c.l.b16 %v407
    %v475 = vunpack.c.l.b16 %v408
    %v476 = vunpack.c.l.b16 %v409
    %v477 = vunpack.c.l.b16 %v410
    %v478 = vunpack.c.l.b16 %v411
    %v479 = vunpack.c.l.b16 %v412
    %v480 = vunpack.c.l.b16 %v413
    %v481 = vunpack.c.l.b16 %v414
    %v482 = vunpack.c.l.b16 %v415
    %v483 = vunpack.c.l.b16 %v416
    %v484 = vunpack.c.l.b16 %v417
    %v485 = vunpack.c.l.b16 %v418
    %v486 = vpack.c.b16 %v455, %v454
    %v487 = vpack.c.b16 %v457, %v456
    %v488 = vpack.c.b16 %v459, %v458
    %v489 = vpack.c.b16 %v461, %v460
    %v490 = vpack.c.b16 %v463, %v462
    %v491 = vpack.c.b16 %v465, %v464
    %v492 = vpack.c.b16 %v467, %v466
    %v493 = vpack.c.b16 %v469, %v468
    %v494 = vpack.c.b16 %v471, %v470
    %v495 = vpack.c.b16 %v473, %v472
    %v496 = vpack.c.b16 %v475, %v474
    %v497 = vpack.c.b16 %v477, %v476
    %v498 = vpack.c.b16 %v479, %v478
    %v499 = vpack.c.b16 %v481, %v480
    %v500 = vpack.c.b16 %v483, %v482
    %v501 = vpack.c.b16 %v485, %v484
    %518 = vmatpush.bf16.msra.mxu0 %v493
    %519 = vmatpush.bf16.msra.mxu0 %v492
    %520 = vmatpush.bf16.msra.mxu0 %v491
    %521 = vmatpush.bf16.msra.mxu0 %v490
    %522 = vmatpush.bf16.msra.mxu0 %v489
    %523 = vmatpush.bf16.msra.mxu0 %v488
    %524 = vmatpush.bf16.msra.mxu0 %v487
    %525 = vmatpush.bf16.msra.mxu0 %v486
    %526 = vmatmul.bf16.gmra.mxu0 %v379
    %v527 = vpop.f32.mrf.mxu0
    %v528 = vadd.f32 %v420, %v527
    %v529 = vpop.f32.mrf.mxu0
    %v530 = vadd.f32 %v420, %v529
    %531 = vmatmul.bf16.gmra.mxu0 %v381
    %v532 = vpop.f32.mrf.mxu0
    %v533 = vadd.f32 %v420, %v532
    %v534 = vpop.f32.mrf.mxu0
    %v535 = vadd.f32 %v420, %v534
    %536 = vmatmul.bf16.gmra.mxu0 %v383
    %v537 = vpop.f32.mrf.mxu0
    %v538 = vadd.f32 %v420, %v537
    %v539 = vpop.f32.mrf.mxu0
    %v540 = vadd.f32 %v420, %v539
    %541 = vmatmul.bf16.gmra.mxu0 %v385
    %v542 = vpop.f32.mrf.mxu0
    %v543 = vadd.f32 %v420, %v542
    %v544 = vpop.f32.mrf.mxu0
    %v545 = vadd.f32 %v420, %v544
    %546 = vdwg.mxu0
    %547 = vmatpush.bf16.msra.mxu0 %v501
    %548 = vmatpush.bf16.msra.mxu0 %v500
    %549 = vmatpush.bf16.msra.mxu0 %v499
    %550 = vmatpush.bf16.msra.mxu0 %v498
    %551 = vmatpush.bf16.msra.mxu0 %v497
    %552 = vmatpush.bf16.msra.mxu0 %v496
    %553 = vmatpush.bf16.msra.mxu0 %v495
    %554 = vmatpush.bf16.msra.mxu0 %v494
    %555 = vmatmul.bf16.gmra.mxu0 %v380
    %v556 = vpop.f32.mrf.mxu0
    %v557 = vadd.f32 %v528, %v556
    %v558 = vpop.f32.mrf.mxu0
    %v559 = vadd.f32 %v530, %v558
    %560 = vmatmul.bf16.gmra.mxu0 %v382
    %v561 = vpop.f32.mrf.mxu0
    %v562 = vadd.f32 %v533, %v561
    %v563 = vpop.f32.mrf.mxu0
    %v564 = vadd.f32 %v535, %v563
    %565 = vmatmul.bf16.gmra.mxu0 %v384
    %v566 = vpop.f32.mrf.mxu0
    %v567 = vadd.f32 %v538, %v566
    %v568 = vpop.f32.mrf.mxu0
    %v569 = vadd.f32 %v540, %v568
    %570 = vmatmul.bf16.gmra.mxu0 %v386
    %v571 = vpop.f32.mrf.mxu0
    %v572 = vadd.f32 %v543, %v571
    %v573 = vpop.f32.mrf.mxu0
    %v574 = vadd.f32 %v545, %v573
    %575 = vdwg.mxu0
    %v576 = vtanh.pop %v557
    %v577 = vtanh.pop %v559
    %v578 = vtanh.pop %v562
    %v579 = vtanh.pop %v564
    %v580 = vtanh.pop %v567
    %v581 = vtanh.pop %v569
    %v582 = vtanh.pop %v572
    %v583 = vtanh.pop %v574
    %v584 = vadd.f32 %v576, 1.0
    %v585 = vadd.f32 %v577, 1.0
    %v586 = vadd.f32 %v578, 1.0
    %v587 = vadd.f32 %v579, 1.0
    %v588 = vadd.f32 %v580, 1.0
    %v589 = vadd.f32 %v581, 1.0
    %v590 = vadd.f32 %v582, 1.0
    %v591 = vadd.f32 %v583, 1.0
    %v592 = vstv %s37
    %v593 = vmul.f32 %v584, %v592
    %v594 = vmul.f32 %v585, %v592
    %v595 = vmul.f32 %v586, %v592
    %v596 = vmul.f32 %v587, %v592
    %v597 = vmul.f32 %v588, %v592
    %v598 = vmul.f32 %v589, %v592
    %v599 = vmul.f32 %v590, %v592
    %v600 = vmul.f32 %v591, %v592
    %v601 = vstv %s38
    %v602 = vadd.f32 %v593, %v601
    %v603 = vadd.f32 %v594, %v601
    %v604 = vadd.f32 %v595, %v601
    %v605 = vadd.f32 %v596, %v601
    %v606 = vadd.f32 %v597, %v601
    %v607 = vadd.f32 %v598, %v601
    %v608 = vadd.f32 %v599, %v601
    %v609 = vadd.f32 %v600, %v601
    %vm610 = vcmask 31744
    %611 = vst.msk [vmem:[%s6] sm:$0xff] %vm610, %v602
    %612 = vst.msk [vmem:[%s6 + $0x8] sm:$0xff] %vm610, %v603
    %613 = vst.msk [vmem:[%s6 + $0x10] sm:$0xff] %vm610, %v604
    %614 = vst.msk [vmem:[%s6 + $0x18] sm:$0xff] %vm610, %v605
    %615 = vst.msk [vmem:[%s6 + $0x20] sm:$0xff] %vm610, %v606
    %616 = vst.msk [vmem:[%s6 + $0x28] sm:$0xff] %vm610, %v607
    %617 = vst.msk [vmem:[%s6 + $0x30] sm:$0xff] %vm610, %v608
    %618 = vst.msk [vmem:[%s6 + $0x38] sm:$0xff] %vm610, %v609
    // Predicated region
    $region30: #{tpu_custom_call.1} parent=1 // pred_check
      _
    $region31: #{tpu_custom_call.1} parent=1 // pred_check_branch
      %620 = sbr.rel (0) target = $region33
    $region32: #{tpu_custom_call.1} parent=1 // pred_region
      _
    $region33: #{tpu_custom_call.1} parent=1 // pred_fallthru
      _
    // Predicated region
    $region34: #{tpu_custom_call.1} parent=1 // pred_check
      _
    $region35: #{tpu_custom_call.1} parent=1 // pred_check_branch
      %622 = sbr.rel (0) target = $region37
    $region36: #{tpu_custom_call.1} parent=1 // pred_region
      _
    $region37: #{tpu_custom_call.1} parent=1 // pred_fallthru
      _
    %623 = vsyncpa [#allocation3], 1

</llo_original>
